<compile_context>
chip_gen: v6e
topology: v6e:2x2x1
jax: 0.10.0
libtpu: 0.0.40
codegen_flags: <defaults>
</compile_context>

<pallas_src>
import math
import functools

import numpy as np
import jax
import jax.numpy as jnp
from jax.experimental import pallas as pl
from jax.experimental.pallas import tpu as pltpu

NEG_INF = -1e9                      # finite stand-in for -inf mask value
ACT_DTYPE = jnp.bfloat16            # activation dtype in HBM
WEIGHT_DTYPE = jnp.bfloat16         # MXU operand dtype (accumulation stays f32)


def _default_vmem_limit():
    try:
        cap = pltpu.get_tpu_info().vmem_capacity_bytes
    except Exception:
        cap = 64 * 1024 * 1024      # assume the smallest (v7x) if the query is unavailable
    # ~100 MiB on v5e/v6e (128 MiB physical), ~48 MiB on v7x (64 MiB physical).
    return min(int(cap * 0.75), 100 * 1024 * 1024)


VMEM_LIMIT = _default_vmem_limit()


def _fit(dim, target, align):
    """Largest tile <= target that is a multiple of `align` and divides `dim`; else the full dim."""
    if dim <= target:
        return dim
    t = (min(target, dim) // align) * align
    while t >= align:
        if dim % t == 0:
            return t
        t -= align
    return dim


def _round_up(x, m):
    return ((x + m - 1) // m) * m


# ----------------------------- Pallas kernels -----------------------------

def _linear_kernel(x_ref, w_ref, b_ref, o_ref, acc_ref):
    # x: (tm, tk) bf16, w: (tk, tn) bf16 (pre-transposed), b: (1, tn) f32
    @pl.when(pl.program_id(2) == 0)
    def _():
        acc_ref[...] = jnp.zeros_like(acc_ref)

    acc_ref[...] += jnp.dot(x_ref[...], w_ref[...], preferred_element_type=jnp.float32)

    @pl.when(pl.program_id(2) == pl.num_programs(2) - 1)
    def _():
        o_ref[...] = (acc_ref[...] + b_ref[...]).astype(o_ref.dtype)


def linear(x, w, b, out_dtype=ACT_DTYPE, tm=256, tn=512, tk=1024):
    """x: (M, K) bf16, w: (K, N) bf16 pre-transposed, b: (N,) f32 -> (M, N) out_dtype."""
    M, K = x.shape
    Kw, N = w.shape
    assert Kw == K
    tm = _fit(M, tm, 8)
    tn = _fit(N, tn, 128)
    tk = _fit(K, tk, 128)
    grid = (M // tm, N // tn, K // tk)
    return pl.pallas_call(
        _linear_kernel,
        out_shape=jax.ShapeDtypeStruct((M, N), out_dtype),
        grid=grid,
        in_specs=[
            pl.BlockSpec((tm, tk), lambda i, j, k: (i, k)),
            pl.BlockSpec((tk, tn), lambda i, j, k: (k, j)),
            pl.BlockSpec((1, tn), lambda i, j, k: (0, j)),
        ],
        out_specs=pl.BlockSpec((tm, tn), lambda i, j, k: (i, j)),
        scratch_shapes=[pltpu.VMEM((tm, tn), jnp.float32)],
        compiler_params=pltpu.CompilerParams(
            dimension_semantics=("parallel", "parallel", "arbitrary"),
            vmem_limit_bytes=VMEM_LIMIT),
    )(x, w, b.reshape(1, N))


def _split_linear_kernel(x_ref, w_ref, b_ref, *refs, nsplit, dout):
    # one matmul against the fused (tk, nsplit*dout) weight; finalize scatters into
    # nsplit separate lane-dense outputs -> no XLA slicing copies downstream.
    out_refs = refs[:nsplit]
    acc_ref = refs[nsplit]

    @pl.when(pl.program_id(1) == 0)
    def _():
        acc_ref[...] = jnp.zeros_like(acc_ref)

    acc_ref[...] += jnp.dot(x_ref[...], w_ref[...], preferred_element_type=jnp.float32)

    @pl.when(pl.program_id(1) == pl.num_programs(1) - 1)
    def _():
        y = acc_ref[...] + b_ref[...]
        for s in range(nsplit):
            out_refs[s][...] = y[:, s * dout:(s + 1) * dout].astype(out_refs[s].dtype)


def split_linear(x, w, b, nsplit, tm=256, tk=1024):
    """Fused projection: x (M,K) bf16 @ w (K, nsplit*d) bf16 + b -> nsplit x (M,d) bf16."""
    M, K = x.shape
    N = w.shape[1]
    assert N % nsplit == 0
    dout = N // nsplit
    tm = _fit(M, tm, 8)
    tk = _fit(K, tk, 128)
    grid = (M // tm, K // tk)
    return pl.pallas_call(
        functools.partial(_split_linear_kernel, nsplit=nsplit, dout=dout),
        out_shape=tuple(jax.ShapeDtypeStruct((M, dout), ACT_DTYPE) for _ in range(nsplit)),
        grid=grid,
        in_specs=[
            pl.BlockSpec((tm, tk), lambda i, k: (i, k)),
            pl.BlockSpec((tk, N), lambda i, k: (k, 0)),
            pl.BlockSpec((1, N), lambda i, k: (0, 0)),
        ],
        out_specs=tuple(pl.BlockSpec((tm, dout), lambda i, k: (i, 0)) for _ in range(nsplit)),
        scratch_shapes=[pltpu.VMEM((tm, N), jnp.float32)],
        compiler_params=pltpu.CompilerParams(
            dimension_semantics=("parallel", "arbitrary"),
            vmem_limit_bytes=VMEM_LIMIT),
    )(x, w, b.reshape(1, N))


def _linear_add_ln_kernel(x_ref, w_ref, b_ref, r_ref, g_ref, bt_ref, o_ref, acc_ref):
    # out = LayerNorm(residual + x @ w + b); K is the reduction grid axis.
    @pl.when(pl.program_id(1) == 0)
    def _():
        acc_ref[...] = jnp.zeros_like(acc_ref)

    acc_ref[...] += jnp.dot(x_ref[...], w_ref[...], preferred_element_type=jnp.float32)

    @pl.when(pl.program_id(1) == pl.num_programs(1) - 1)
    def _():
        y = acc_ref[...] + b_ref[...] + r_ref[...].astype(jnp.float32)
        mean = jnp.mean(y, axis=-1, keepdims=True)
        var = jnp.mean(jnp.square(y - mean), axis=-1, keepdims=True)
        inv = jax.lax.rsqrt(var + 1e-5)
        o_ref[...] = ((y - mean) * inv * g_ref[...] + bt_ref[...]).astype(o_ref.dtype)


def linear_add_ln(x, w, b, residual, gamma, beta, tm=256, tk=1024):
    """LN(residual + x @ w + b): x (M,K) bf16, w (K,D) bf16, residual (M,D) bf16 -> (M,D) bf16."""
    M, K = x.shape
    D = w.shape[1]
    tm = _fit(M, tm, 8)
    tk = _fit(K, tk, 128)
    grid = (M // tm, K // tk)
    return pl.pallas_call(
        _linear_add_ln_kernel,
        out_shape=jax.ShapeDtypeStruct((M, D), ACT_DTYPE),
        grid=grid,
        in_specs=[
            pl.BlockSpec((tm, tk), lambda i, k: (i, k)),
            pl.BlockSpec((tk, D), lambda i, k: (k, 0)),
            pl.BlockSpec((1, D), lambda i, k: (0, 0)),
            pl.BlockSpec((tm, D), lambda i, k: (i, 0)),
            pl.BlockSpec((1, D), lambda i, k: (0, 0)),
            pl.BlockSpec((1, D), lambda i, k: (0, 0)),
        ],
        out_specs=pl.BlockSpec((tm, D), lambda i, k: (i, 0)),
        scratch_shapes=[pltpu.VMEM((tm, D), jnp.float32)],
        compiler_params=pltpu.CompilerParams(
            dimension_semantics=("parallel", "arbitrary"),
            vmem_limit_bytes=VMEM_LIMIT),
    )(x, w, b.reshape(1, D), residual, gamma.reshape(1, D), beta.reshape(1, D))


def _ffn_ln_kernel(x_ref, w1_ref, b1_ref, w2_ref, b2_ref, g_ref, bt_ref, o_ref, acc_ref):
    # out = LayerNorm(x + relu(x @ w1 + b1) @ w2 + b2); F tiled as the reduction grid axis,
    # the (tm, tf) intermediate never touches HBM.
    @pl.when(pl.program_id(1) == 0)
    def _():
        acc_ref[...] = jnp.zeros_like(acc_ref)

    x = x_ref[...]
    h = jnp.dot(x, w1_ref[...], preferred_element_type=jnp.float32) + b1_ref[...]
    h = jnp.maximum(h, 0.0)
    acc_ref[...] += jnp.dot(h.astype(jnp.bfloat16), w2_ref[...],
                            preferred_element_type=jnp.float32)

    @pl.when(pl.program_id(1) == pl.num_programs(1) - 1)
    def _():
        y = acc_ref[...] + b2_ref[...] + x.astype(jnp.float32)
        mean = jnp.mean(y, axis=-1, keepdims=True)
        var = jnp.mean(jnp.square(y - mean), axis=-1, keepdims=True)
        inv = jax.lax.rsqrt(var + 1e-5)
        o_ref[...] = ((y - mean) * inv * g_ref[...] + bt_ref[...]).astype(o_ref.dtype)


def ffn_add_ln(x, w1, b1, w2, b2, gamma, beta, tm=256, tf=2048):
    """x: (M,D) bf16, w1: (D,F) bf16, w2: (F,D) bf16 -> LN(x + FFN(x)) (M,D) bf16."""
    M, D = x.shape
    F = w1.shape[1]
    tm = _fit(M, tm, 8)
    tf = _fit(F, tf, 128)
    grid = (M // tm, F // tf)
    return pl.pallas_call(
        _ffn_ln_kernel,
        out_shape=jax.ShapeDtypeStruct((M, D), ACT_DTYPE),
        grid=grid,
        in_specs=[
            pl.BlockSpec((tm, D), lambda i, f: (i, 0)),
            pl.BlockSpec((D, tf), lambda i, f: (0, f)),
            pl.BlockSpec((1, tf), lambda i, f: (0, f)),
            pl.BlockSpec((tf, D), lambda i, f: (f, 0)),
            pl.BlockSpec((1, D), lambda i, f: (0, 0)),
            pl.BlockSpec((1, D), lambda i, f: (0, 0)),
            pl.BlockSpec((1, D), lambda i, f: (0, 0)),
        ],
        out_specs=pl.BlockSpec((tm, D), lambda i, f: (i, 0)),
        scratch_shapes=[pltpu.VMEM((tm, D), jnp.float32)],
        compiler_params=pltpu.CompilerParams(
            dimension_semantics=("parallel", "arbitrary"),
            vmem_limit_bytes=VMEM_LIMIT),
    )(x, w1, b1.reshape(1, F), w2, b2.reshape(1, D),
      gamma.reshape(1, D), beta.reshape(1, D))


def _attention_kernel(*refs, n_head, scale, causal, has_mask):
    # blocks: q/o (1, tq, D) bf16, k/v (1, Sk, D) bf16, kp (1, 1, Sk) f32, [mask (tq, Sk) bf16]
    if has_mask:
        q_ref, k_ref, v_ref, kp_ref, m_ref, o_ref = refs
    else:
        q_ref, k_ref, v_ref, kp_ref, o_ref = refs
        m_ref = None

    q = q_ref[0]
    k = k_ref[0]
    v = v_ref[0]
    tq, D = q.shape
    Sk = k.shape[0]
    Dh = D // n_head

    bias = kp_ref[0]                                           # (1, Sk) f32 padding bias
    if m_ref is not None:
        bias = bias + m_ref[...].astype(jnp.float32)           # dense user mask (bf16 in HBM)
    if causal:
        q0 = pl.program_id(1) * tq
        row = jax.lax.broadcasted_iota(jnp.int32, (tq, Sk), 0) + q0
        col = jax.lax.broadcasted_iota(jnp.int32, (tq, Sk), 1)
        bias = bias + jnp.where(col > row, jnp.float32(NEG_INF), jnp.float32(0.0))

    for h in range(n_head):                                    # static per-head loop
        sl = slice(h * Dh, (h + 1) * Dh)
        s = jax.lax.dot_general(q[:, sl], k[:, sl], (((1,), (1,)), ((), ())),
                                preferred_element_type=jnp.float32)
        s = s * scale + bias
        s = s - jnp.max(s, axis=-1, keepdims=True)
        p = jnp.exp(s)
        p = p * pl.reciprocal(jnp.sum(p, axis=-1, keepdims=True), approx=True)
        # write each head directly into its output lane slice (no deferred concatenate)
        o_ref[0, :, sl] = jnp.dot(p.astype(jnp.bfloat16), v[:, sl],
                                  preferred_element_type=jnp.float32).astype(o_ref.dtype)


def attention(q, k, v, pad_bias, n_head, scale, causal=False, dense_mask=None, tq=256):
    """q: (B,Sq,D) bf16, k/v: (B,Sk,D) bf16, pad_bias: (B,Sk) f32, dense_mask: (Sq,Sk) bf16|None."""
    B, Sq, D = q.shape
    Sk = k.shape[1]
    tq = _fit(Sq, tq, 8)
    grid = (B, Sq // tq)

    in_specs = [
        pl.BlockSpec((1, tq, D), lambda b, qi: (b, qi, 0)),
        pl.BlockSpec((1, Sk, D), lambda b, qi: (b, 0, 0)),
        pl.BlockSpec((1, Sk, D), lambda b, qi: (b, 0, 0)),
        pl.BlockSpec((1, 1, Sk), lambda b, qi: (b, 0, 0)),
    ]
    args = [q, k, v, pad_bias.reshape(B, 1, Sk)]
    if dense_mask is not None:
        in_specs.append(pl.BlockSpec((tq, Sk), lambda b, qi: (qi, 0)))
        args.append(dense_mask)

    return pl.pallas_call(
        functools.partial(_attention_kernel, n_head=n_head, scale=scale,
                          causal=causal, has_mask=dense_mask is not None),
        out_shape=jax.ShapeDtypeStruct((B, Sq, D), ACT_DTYPE),
        grid=grid,
        in_specs=in_specs,
        out_specs=pl.BlockSpec((1, tq, D), lambda b, qi: (b, qi, 0)),
        compiler_params=pltpu.CompilerParams(
            dimension_semantics=("parallel", "parallel"),
            vmem_limit_bytes=VMEM_LIMIT),
    )(*args)


# ----------------------------- model glue -----------------------------

def pad_bias_from_mask(mask, shape):
    """bool key-padding mask (True = masked) -> additive f32 bias; None -> zeros."""
    if mask is None:
        return jnp.zeros(shape, jnp.float32)
    return jnp.where(mask, jnp.float32(NEG_INF), jnp.float32(0.0))


def classify_mask(mask):
    """bool attn mask (True = masked) -> (causal flag, dense bf16 bias or None)."""
    if mask is None:
        return False, None
    m = np.asarray(mask).astype(bool)
    if m.ndim == 2 and m.shape[0] == m.shape[1] and \
            np.array_equal(m, ~np.tri(m.shape[0], dtype=bool)):
        return True, None          # standard subsequent (causal) mask -> built in-kernel
    return False, jnp.where(jnp.asarray(m), jnp.float32(NEG_INF), jnp.float32(0.0)).astype(ACT_DTYPE)


def self_attention_block(x, p, n_head, pad_b, causal, dense_mask):
    B, S, D = x.shape
    q, k, v = split_linear(x.reshape(B * S, D), p["w_qkv"], p["b_qkv"], 3)
    return attention(q.reshape(B, S, D), k.reshape(B, S, D), v.reshape(B, S, D),
                     pad_b, n_head, 1.0 / math.sqrt(D // n_head), causal, dense_mask)


def encoder_layer(x, p, n_head, pad_b, causal, dense_mask):
    # post-norm (norm_first=False), ReLU activation, dropout = identity
    B, S, D = x.shape
    attn = self_attention_block(x, p["self_attn"], n_head, pad_b, causal, dense_mask)
    x2 = linear_add_ln(attn.reshape(B * S, D), p["self_attn"]["w_o"], p["self_attn"]["b_o"],
                       x.reshape(B * S, D), p["norm1_g"], p["norm1_b"])
    x3 = ffn_add_ln(x2, p["lin1_w"], p["lin1_b"], p["lin2_w"], p["lin2_b"],
                    p["norm2_g"], p["norm2_b"])
    return x3.reshape(B, S, D)


def decoder_layer(y, memory, p, n_head, tgt_pad, tgt_causal, tgt_dense, mem_pad,
                  mem_causal, mem_dense):
    B, St, D = y.shape
    Sk = memory.shape[1]

    # self-attention + fused out-proj/residual/norm1
    sa = self_attention_block(y, p["self_attn"], n_head, tgt_pad, tgt_causal, tgt_dense)
    y2 = linear_add_ln(sa.reshape(B * St, D), p["self_attn"]["w_o"], p["self_attn"]["b_o"],
                       y.reshape(B * St, D), p["norm1_g"], p["norm1_b"])

    # cross-attention + fused out-proj/residual/norm2
    cp = p["cross_attn"]
    q = linear(y2, cp["w_q"], cp["b_q"])
    k, v = split_linear(memory.reshape(B * Sk, D), cp["w_kv"], cp["b_kv"], 2)
    ca = attention(q.reshape(B, St, D), k.reshape(B, Sk, D), v.reshape(B, Sk, D),
                   mem_pad, n_head, 1.0 / math.sqrt(D // n_head), mem_causal, mem_dense)
    y3 = linear_add_ln(ca.reshape(B * St, D), cp["w_o"], cp["b_o"], y2,
                       p["norm2_g"], p["norm2_b"])

    # FFN + fused residual/norm3
    y4 = ffn_add_ln(y3, p["lin1_w"], p["lin1_b"], p["lin2_w"], p["lin2_b"],
                    p["norm3_g"], p["norm3_b"])
    return y4.reshape(B, St, D)


def positional_encoding(max_len, d_model):
    position = jnp.arange(max_len, dtype=jnp.float32)[:, None]
    div_term = jnp.exp(jnp.arange(0, d_model, 2, dtype=jnp.float32)
                       * (-math.log(10000.0) / d_model))
    pe = jnp.zeros((max_len, d_model), jnp.float32)
    pe = pe.at[:, 0::2].set(jnp.sin(position * div_term))
    pe = pe.at[:, 1::2].set(jnp.cos(position * div_term))
    return pe


def transformer_forward(params, src, tgt, src_mask, src_padding_mask,
                        tgt_mask, tgt_padding_mask, mem_padding_mask,
                        memory_mask, n_head, n_embed):
    pe = params["pe"]
    B, Ss = src.shape
    _, St = tgt.shape
    emb_scale = math.sqrt(n_embed)
    vocab = params["src_emb"].shape[0]

    src_pad = pad_bias_from_mask(src_padding_mask, (B, Ss))
    tgt_pad = pad_bias_from_mask(tgt_padding_mask, (B, St))
    mem_pad = pad_bias_from_mask(mem_padding_mask, (B, Ss))
    src_causal, src_dense = classify_mask(src_mask)
    tgt_causal, tgt_dense = classify_mask(tgt_mask)
    mem_causal, mem_dense = classify_mask(memory_mask)

    # ---- encode ----
    x = (params["src_emb"][src] * emb_scale + pe[:Ss][None, :, :]).astype(ACT_DTYPE)
    for lp in params["enc_layers"]:
        x = encoder_layer(x, lp, n_head, src_pad, src_causal, src_dense)
    memory = x

    # ---- decode ----
    y = (params["tgt_emb"][tgt] * emb_scale + pe[:St][None, :, :]).astype(ACT_DTYPE)
    for lp in params["dec_layers"]:
        y = decoder_layer(y, memory, lp, n_head, tgt_pad, tgt_causal, tgt_dense,
                          mem_pad, mem_causal, mem_dense)

    # ---- final projection to (padded) vocab; slice back to the true vocab ----
    logits = linear(y.reshape(B * St, n_embed), params["out_w"], params["out_b"],
                    out_dtype=jnp.float32)
    return logits[:, :vocab].reshape(B, St, vocab)


# ----------------------------- deterministic init -----------------------------

def init_params(key, vocab, d, n_head, n_ff, n_layers, max_len=64):
    keys = iter(jax.random.split(key, 256))

    def u(shape, scale=0.1, dtype=WEIGHT_DTYPE):
        return jax.random.uniform(next(keys), shape, jnp.float32, -scale, scale).astype(dtype)

    def zeros(n):
        return jnp.zeros((n,), jnp.float32)

    def self_attn_p():
        return dict(w_qkv=u((d, 3 * d)), b_qkv=zeros(3 * d),
                    w_o=u((d, d)), b_o=zeros(d))

    def cross_attn_p():
        return dict(w_q=u((d, d)), b_q=zeros(d),
                    w_kv=u((d, 2 * d)), b_kv=zeros(2 * d),
                    w_o=u((d, d)), b_o=zeros(d))

    def enc_p():
        return dict(self_attn=self_attn_p(),
                    lin1_w=u((d, n_ff)), lin1_b=zeros(n_ff),
                    lin2_w=u((n_ff, d)), lin2_b=zeros(d),
                    norm1_g=jnp.ones((d,), jnp.float32), norm1_b=zeros(d),
                    norm2_g=jnp.ones((d,), jnp.float32), norm2_b=zeros(d))

    def dec_p():
        return dict(self_attn=self_attn_p(), cross_attn=cross_attn_p(),
                    lin1_w=u((d, n_ff)), lin1_b=zeros(n_ff),
                    lin2_w=u((n_ff, d)), lin2_b=zeros(d),
                    norm1_g=jnp.ones((d,), jnp.float32), norm1_b=zeros(d),
                    norm2_g=jnp.ones((d,), jnp.float32), norm2_b=zeros(d),
                    norm3_g=jnp.ones((d,), jnp.float32), norm3_b=zeros(d))

    vocab_pad = _round_up(vocab, 128)   # lane-dense vocab projection; extra columns sliced off
    return dict(
        src_emb=u((vocab, d), dtype=jnp.float32),   # nn.init.uniform_(-0.1, 0.1)
        tgt_emb=u((vocab, d), dtype=jnp.float32),
        out_w=u((d, vocab_pad)),                    # final linear: uniform weight, zero bias
        out_b=zeros(vocab_pad),
        enc_layers=[enc_p() for _ in range(n_layers)],
        dec_layers=[dec_p() for _ in range(n_layers)],
        pe=positional_encoding(max_len, d),
    )


# ----------------------------- demo -----------------------------

if __name__ == "__main__":
    vocab_size, n_embed, n_head, n_ff, n_layers = 50, 32, 4, 64, 2
    B, Ss, St = 2, 8, 8

    key = jax.random.PRNGKey(0)
    k_param, k_src, k_tgt = jax.random.split(key, 3)
    params = init_params(k_param, vocab_size, n_embed, n_head, n_ff, n_layers)

    src = jax.random.randint(k_src, (B, Ss), 0, vocab_size, dtype=jnp.int32)
    tgt = jax.random.randint(k_tgt, (B, St), 0, vocab_size, dtype=jnp.int32)

    # masks (True = masked / padded, PyTorch boolean-mask semantics)
    src_mask = None
    memory_mask = None
    tgt_mask = ~jnp.tril(jnp.ones((St, St), dtype=bool))          # causal subsequent mask
    src_padding_mask = jnp.zeros((B, Ss), dtype=bool).at[1, Ss - 2:].set(True)
    tgt_padding_mask = jnp.zeros((B, St), dtype=bool).at[0, St - 1:].set(True)
    mem_padding_mask = src_padding_mask

    out = transformer_forward(params, src, tgt, src_mask, src_padding_mask,
                              tgt_mask, tgt_padding_mask, mem_padding_mask,
                              memory_mask, n_head, n_embed)
    out = jax.block_until_ready(out)
    assert out.shape == (B, St, vocab_size), out.shape
    assert bool(jnp.all(jnp.isfinite(out)))
    print("KERNEL_OK")
</pallas_src>

<mosaic_0001>
module attributes {stable_mosaic.version = 11 : i64} {
  func.func @_split_linear_kernel(%arg0: i32, %arg1: i32, %arg2: memref<16x32xbf16, #tpu.memory_space<vmem>>, %arg3: memref<32x96xbf16, #tpu.memory_space<vmem>>, %arg4: memref<1x96xf32, #tpu.memory_space<vmem>>, %arg5: memref<16x32xbf16, #tpu.memory_space<vmem>>, %arg6: memref<16x32xbf16, #tpu.memory_space<vmem>>, %arg7: memref<16x32xbf16, #tpu.memory_space<vmem>>, %arg8: memref<16x96xf32, #tpu.memory_space<vmem>>) attributes {dimension_semantics = [#tpu.dimension_semantics<parallel>, #tpu.dimension_semantics<arbitrary>], iteration_bounds = array<i64: 1, 1>, scalar_prefetch = 0 : i64, scratch_operands = 1 : i64, tpu.core_type = #tpu.core_type<tc>, window_params = [{transform_indices = @transform_0, window_bounds = array<i64: 16, 32>}, {transform_indices = @transform_1, window_bounds = array<i64: 32, 96>}, {pipeline_mode = #tpu.pipeline_mode<synchronous>, transform_indices = @transform_2, window_bounds = array<i64: 1, 96>}, {transform_indices = @transform_3, window_bounds = array<i64: 16, 32>}, {transform_indices = @transform_4, window_bounds = array<i64: 16, 32>}, {transform_indices = @transform_5, window_bounds = array<i64: 16, 32>}]} {
    %c0_i32 = arith.constant 0 : i32
    %0 = arith.cmpi eq, %arg1, %c0_i32 : i32
    %1 = arith.extui %0 : i1 to i32
    %c0_i32_0 = arith.constant 0 : i32
    %2 = arith.cmpi ne, %1, %c0_i32_0 : i32
    scf.if %2 {
      %cst_10 = arith.constant 0.000000e+00 : f32
      %12 = vector.broadcast %cst_10 : f32 to vector<16x96xf32>
      %c0_11 = arith.constant 0 : index
      %c0_12 = arith.constant 0 : index
      %13 = vector.load %arg8[%c0_11, %c0_12] : memref<16x96xf32, #tpu.memory_space<vmem>>, vector<16x96xf32>
      tpu.vector_store %arg8[%c0_11, %c0_12], %12 {strides = array<i32>} : memref<16x96xf32, #tpu.memory_space<vmem>>, vector<16x96xf32>,
    } else {
    }
    %c0 = arith.constant 0 : index
    %c0_1 = arith.constant 0 : index
    %3 = vector.load %arg8[%c0, %c0_1] : memref<16x96xf32, #tpu.memory_space<vmem>>, vector<16x96xf32>
    %c0_2 = arith.constant 0 : index
    %c0_3 = arith.constant 0 : index
    %4 = vector.load %arg2[%c0_2, %c0_3] : memref<16x32xbf16, #tpu.memory_space<vmem>>, vector<16x32xbf16>
    %c0_4 = arith.constant 0 : index
    %c0_5 = arith.constant 0 : index
    %5 = vector.load %arg3[%c0_4, %c0_5] : memref<32x96xbf16, #tpu.memory_space<vmem>>, vector<32x96xbf16>
    %cst = arith.constant dense<0.000000e+00> : vector<16x96xf32>
    %6 = tpu.matmul %4, %5, %cst {dimension_numbers = #tpu.dot_dimension_numbers<[1], [0], [0], [1], [0, 0, 1, 1], [], []>} : vector<16x32xbf16>, vector<32x96xbf16>, vector<16x96xf32> -> vector<16x96xf32>
    %7 = arith.addf %3, %6 : vector<16x96xf32>
    %c0_6 = arith.constant 0 : index
    %c0_7 = arith.constant 0 : index
    %8 = vector.load %arg8[%c0_6, %c0_7] : memref<16x96xf32, #tpu.memory_space<vmem>>, vector<16x96xf32>
    tpu.vector_store %arg8[%c0_6, %c0_7], %7 {strides = array<i32>} : memref<16x96xf32, #tpu.memory_space<vmem>>, vector<16x96xf32>,
    %c0_i32_8 = arith.constant 0 : i32
    %9 = arith.cmpi eq, %arg1, %c0_i32_8 : i32
    %10 = arith.extui %9 : i1 to i32
    %c0_i32_9 = arith.constant 0 : i32
    %11 = arith.cmpi ne, %10, %c0_i32_9 : i32
    scf.if %11 {
      %c0_10 = arith.constant 0 : index
      %c0_11 = arith.constant 0 : index
      %12 = vector.load %arg8[%c0_10, %c0_11] : memref<16x96xf32, #tpu.memory_space<vmem>>, vector<16x96xf32>
      %c0_12 = arith.constant 0 : index
      %c0_13 = arith.constant 0 : index
      %13 = vector.load %arg4[%c0_12, %c0_13] : memref<1x96xf32, #tpu.memory_space<vmem>>, vector<1x96xf32>
      %14 = vector.broadcast %13 : vector<1x96xf32> to vector<16x96xf32>
      %15 = arith.addf %12, %14 : vector<16x96xf32>
      %16 = vector.extract_strided_slice %15 {offsets = [0, 0], sizes = [16, 32], strides = [1, 1]} : vector<16x96xf32> to vector<16x32xf32>
      %17 = arith.truncf %16 : vector<16x32xf32> to vector<16x32xbf16>
      %c0_14 = arith.constant 0 : index
      %c0_15 = arith.constant 0 : index
      %18 = vector.load %arg5[%c0_14, %c0_15] : memref<16x32xbf16, #tpu.memory_space<vmem>>, vector<16x32xbf16>
      tpu.vector_store %arg5[%c0_14, %c0_15], %17 {strides = array<i32>} : memref<16x32xbf16, #tpu.memory_space<vmem>>, vector<16x32xbf16>,
      %19 = vector.extract_strided_slice %15 {offsets = [0, 32], sizes = [16, 32], strides = [1, 1]} : vector<16x96xf32> to vector<16x32xf32>
      %20 = arith.truncf %19 : vector<16x32xf32> to vector<16x32xbf16>
      %c0_16 = arith.constant 0 : index
      %c0_17 = arith.constant 0 : index
      %21 = vector.load %arg6[%c0_16, %c0_17] : memref<16x32xbf16, #tpu.memory_space<vmem>>, vector<16x32xbf16>
      tpu.vector_store %arg6[%c0_16, %c0_17], %20 {strides = array<i32>} : memref<16x32xbf16, #tpu.memory_space<vmem>>, vector<16x32xbf16>,
      %22 = vector.extract_strided_slice %15 {offsets = [0, 64], sizes = [16, 32], strides = [1, 1]} : vector<16x96xf32> to vector<16x32xf32>
      %23 = arith.truncf %22 : vector<16x32xf32> to vector<16x32xbf16>
      %c0_18 = arith.constant 0 : index
      %c0_19 = arith.constant 0 : index
      %24 = vector.load %arg7[%c0_18, %c0_19] : memref<16x32xbf16, #tpu.memory_space<vmem>>, vector<16x32xbf16>
      tpu.vector_store %arg7[%c0_18, %c0_19], %23 {strides = array<i32>} : memref<16x32xbf16, #tpu.memory_space<vmem>>, vector<16x32xbf16>,
    } else {
    }
    return
  }
  func.func @transform_0(%arg0: i32, %arg1: i32) -> (i32, i32) {
    %c0_i32 = arith.constant 0 : i32
    return %arg0, %arg1 : i32, i32
  }
  func.func @transform_1(%arg0: i32, %arg1: i32) -> (i32, i32) {
    %c0_i32 = arith.constant 0 : i32
    %c0_i32_0 = arith.constant 0 : i32
    return %arg1, %c0_i32 : i32, i32
  }
  func.func @transform_2(%arg0: i32, %arg1: i32) -> (i32, i32) {
    %c0_i32 = arith.constant 0 : i32
    %c0_i32_0 = arith.constant 0 : i32
    %c0_i32_1 = arith.constant 0 : i32
    return %c0_i32, %c0_i32_0 : i32, i32
  }
  func.func @transform_3(%arg0: i32, %arg1: i32) -> (i32, i32) {
    %c0_i32 = arith.constant 0 : i32
    %c0_i32_0 = arith.constant 0 : i32
    return %arg0, %c0_i32 : i32, i32
  }
  func.func @transform_4(%arg0: i32, %arg1: i32) -> (i32, i32) {
    %c0_i32 = arith.constant 0 : i32
    %c0_i32_0 = arith.constant 0 : i32
    return %arg0, %c0_i32 : i32, i32
  }
  func.func @transform_5(%arg0: i32, %arg1: i32) -> (i32, i32) {
    %c0_i32 = arith.constant 0 : i32
    %c0_i32_0 = arith.constant 0 : i32
    return %arg0, %c0_i32 : i32, i32
  }
}

</mosaic_0001>

<llo_original>
// kernel: tpu_custom_call.1
$region0: #{tpu_custom_call.1}
  #allocation0 [shape = 'u32[]', space=smem, size = 0x4, offset = 0x4, fixed_abs, tag = 'smem constant byte address 0x4 - core index']
  #allocation1 [shape = 'u32[144,128]{1,0:T(1,128)}', space=vmem, size = 0x12000, scoped, tag = 'internal scratch']
  #allocation2 [shape = 'f32[16,96]{1,0:T(8,128)}', space=vmem, size = 0x2000, scoped, tag = 'scratch operand']
  %s0 = inlined_call_operand.hbm [shape: bf16[16,32], index: 0, kind: input, shape index: {}]
  %s1 = inlined_call_operand.hbm [shape: bf16[32,96], index: 1, kind: input, shape index: {}]
  %s2 = inlined_call_operand.vmem [shape: f32[1,96], index: 2, kind: input, shape index: {}]
  %s3 = inlined_call_operand.hbm [shape: bf16[16,32], index: 3, kind: output, shape index: {0}]
  %s4 = inlined_call_operand.hbm [shape: bf16[16,32], index: 4, kind: output, shape index: {1}]
  %s5 = inlined_call_operand.hbm [shape: bf16[16,32], index: 5, kind: output, shape index: {2}]
  %6 = xla_tuple %s3, %s4, %s5
  %s7 = sld [smem:[#allocation0]]
  $region54: #{tpu_custom_call.1} parent=0
    _
  %s9 = ssub.s32 1, %s7
  %s10 = scalar_select 0, %s9, %s7
  $region1: #{tpu_custom_call.1} parent=0
    #allocation3 [shape = 'u8[4096]{0}', space=vmem, size = 0x1000, scoped, tag = 'input window, operand 0, single buffered']
    #allocation4 [shape = 's32[1]{0}', space=sflag, size = 0x4, scoped, tag = 'scoped memory for tpu_custom_call.1']
    #allocation5 [shape = 's32[1]{0}', space=sflag, size = 0x4, scoped, tag = 'scoped memory for tpu_custom_call.1']
    #allocation6 [shape = 'u8[8192]{0}', space=vmem, size = 0x2000, scoped, tag = 'input window, operand 1, single buffered']
    #allocation7 [shape = 's32[1]{0}', space=sflag, size = 0x4, scoped, tag = 'scoped memory for tpu_custom_call.1']
    #allocation8 [shape = 'u8[4096]{0}', space=vmem, size = 0x1000, scoped, tag = 'output window, operand 0, single buffered']
    #allocation9 [shape = 'u8[4096]{0}', space=vmem, size = 0x1000, scoped, tag = 'output window, operand 1, single buffered']
    #allocation10 [shape = 's32[1]{0}', space=sflag, size = 0x4, scoped, tag = 'scoped memory for tpu_custom_call.1']
    #allocation11 [shape = 'u8[4096]{0}', space=vmem, size = 0x1000, scoped, tag = 'output window, operand 2, single buffered']
    %11 = vsyncpa [#allocation4], 0
    %12 = vsyncpa [#allocation7], 0
    %13 = vsyncpa [#allocation5], 0
    %14 = vsyncpa [#allocation10], 0
    // Predicated region
    $region2: #{tpu_custom_call.1} parent=1 // pred_check
      _
    $region3: #{tpu_custom_call.1} parent=1 // pred_check_branch
      %16 = sbr.rel (0) target = $region5
    $region4: #{tpu_custom_call.1} parent=1 // pred_region
      %s18 = ssub.s32 128, 128
      %19 = vsyncadd [#allocation4], %s18
      %s20 = sshll.u32 [#allocation3], 4
      %s21 = int_to_ptr.vmem [resolvable:$true] %s20
      %26 = dma.hbm_to_vmem [thread:$0]  %s0, 128, %s21, [#allocation4], 64, 64, 4
    $region5: #{tpu_custom_call.1} parent=1 // pred_fallthru
      _
    // Predicated region
    $region6: #{tpu_custom_call.1} parent=1 // pred_check
      _
    $region7: #{tpu_custom_call.1} parent=1 // pred_check_branch
      %28 = sbr.rel (0) target = $region9
    $region8: #{tpu_custom_call.1} parent=1 // pred_region
      %s30 = ssub.s32 256, 256
      %31 = vsyncadd [#allocation7], %s30
      %s32 = sshll.u32 [#allocation6], 4
      %s33 = int_to_ptr.vmem [resolvable:$true] %s32
      %38 = dma.hbm_to_vmem [thread:$0]  %s1, 256, %s33, [#allocation7], 64, 64, 4
    $region9: #{tpu_custom_call.1} parent=1 // pred_fallthru
      _
    // Predicated region
    $region10: #{tpu_custom_call.1} parent=1 // pred_check
      _
    $region11: #{tpu_custom_call.1} parent=1 // pred_check_branch
      %40 = sbr.rel (0) target = $region13
    $region12: #{tpu_custom_call.1} parent=1 // pred_region
      _
    $region13: #{tpu_custom_call.1} parent=1 // pred_fallthru
      _
    // Predicated region
    $region14: #{tpu_custom_call.1} parent=1 // pred_check
      _
    $region15: #{tpu_custom_call.1} parent=1 // pred_check_branch
      %42 = sbr.rel (0) target = $region17
    $region16: #{tpu_custom_call.1} parent=1 // pred_region
      %43 = dma.done [#allocation4], 128
    $region17: #{tpu_custom_call.1} parent=1 // pred_fallthru
      _
    // Predicated region
    $region18: #{tpu_custom_call.1} parent=1 // pred_check
      _
    $region19: #{tpu_custom_call.1} parent=1 // pred_check_branch
      %45 = sbr.rel (0) target = $region21
    $region20: #{tpu_custom_call.1} parent=1 // pred_region
      %46 = dma.done [#allocation7], 256
    $region21: #{tpu_custom_call.1} parent=1 // pred_fallthru
      _
    %p48 = scmp.eq.s32.totalorder 0, 0
    // Predicated region
    $region22: #{tpu_custom_call.1} parent=1 // pred_check
      %p49 = pneg %p48
    $region23: #{tpu_custom_call.1} parent=1 // pred_check_branch
      %51 = sbr.rel (%p49) target = $region25
    $region24: #{tpu_custom_call.1} parent=1 // pred_region
      %vm52 = vcmask 785408
      %53 = vst.msk [vmem:[#allocation2] sm:$0xff] %vm52, 0.0
      %54 = vst.msk [vmem:[#allocation2 + $0x8] sm:$0xff] %vm52, 0.0
    $region25: #{tpu_custom_call.1} parent=1 // pred_fallthru
      _
    %v55 = vld [vmem:[#allocation2] sm:$0xff]
    %v56 = vld [vmem:[#allocation2 + $0x8] sm:$0xff]
    %v57 = vld [vmem:[#allocation3] sm:$0xf]
    %v58 = vld [vmem:[#allocation3 + $0x4] sm:$0xf]
    %v59 = vld [vmem:[#allocation6] sm:$0xf]
    %v60 = vld [vmem:[#allocation6 + $0x4] sm:$0xf]
    %v61 = vld [vmem:[#allocation6 + $0x8] sm:$0xf]
    %v62 = vld [vmem:[#allocation6 + $0xc] sm:$0xf]
    %v65 = vunpack.c.l.b16 %v57
    %v66 = vunpack.c.l.b16 %v58
    %v67 = vpack.c.b16 %v66, %v65
    %v72 = vunpack.c.l.b16 %v59
    %v73 = vunpack.c.l.b16 %v60
    %v74 = vunpack.c.l.b16 %v61
    %v75 = vunpack.c.l.b16 %v62
    %v76 = vpack.c.b16 %v73, %v72
    %v77 = vpack.c.b16 %v75, %v74
    %vm80 = vcmask 261120
    %v82 = vsel %vm80, %v67, 0
    %84 = vmatprep.subr.bf16.mxu0 0
    %85 = vmatpush1.bf16.msra.mxu0 0
    %86 = vmatprep.subr.bf16.mxu0 0
    %87 = vmatpush1.bf16.msra.mxu0 0
    %88 = vmatprep.subr.bf16.mxu0 0
    %89 = vmatpush1.bf16.msra.mxu0 0
    %90 = vmatprep.subr.bf16.mxu0 0
    %91 = vmatpush1.bf16.msra.mxu0 0
    %92 = vmatprep.subr.bf16.mxu0 0
    %93 = vmatpush1.bf16.msra.mxu0 0
    %94 = vmatprep.subr.bf16.mxu0 0
    %95 = vmatpush1.bf16.msra.mxu0 0
    %96 = vmatprep.subr.bf16.mxu0 0
    %97 = vmatpush1.bf16.msra.mxu0 %v77
    %98 = vmatprep.subr.bf16.mxu0 0
    %99 = vmatpush1.bf16.msra.mxu0 %v76
    %100 = vmatprep.subr.bf16.mxu0 0
    %101 = vmatpush2.bf16.msra.mxu0 0
    %102 = vmatprep.subr.bf16.mxu0 0
    %103 = vmatpush2.bf16.msra.mxu0 0
    %104 = vmatprep.subr.bf16.mxu0 0
    %105 = vmatpush2.bf16.msra.mxu0 0
    %106 = vmatprep.subr.bf16.mxu0 0
    %107 = vmatpush2.bf16.msra.mxu0 0
    %108 = vmatprep.subr.bf16.mxu0 0
    %109 = vmatpush2.bf16.msra.mxu0 0
    %110 = vmatprep.subr.bf16.mxu0 0
    %111 = vmatpush2.bf16.msra.mxu0 0
    %112 = vmatprep.subr.bf16.mxu0 0
    %113 = vmatpush2.bf16.msra.mxu0 0
    %114 = vmatprep.subr.bf16.mxu0 0
    %115 = vmatpush2.bf16.msra.mxu0 0
    %116 = vmatprep.mubr.bf16.mxu0 0
    %117 = vmatmul.mubr.bf16.gmra.mxu0 %v82
    %v118 = vpop.f32.mrf.mxu0
    %v119 = vadd.f32 0.0, %v118
    %v120 = vpop.f32.mrf.mxu0
    %v121 = vpop.f32.mrf.mxu0
    %v122 = vadd.f32 0.0, %v121
    %v123 = vpop.f32.mrf.mxu0
    %124 = vdwg.mxu0
    %v125 = vadd.f32 %v55, %v119
    %v126 = vadd.f32 %v56, %v122
    %vm127 = vcmask 785408
    %128 = vst.msk [vmem:[#allocation2] sm:$0xff] %vm127, %v125
    %129 = vst.msk [vmem:[#allocation2 + $0x8] sm:$0xff] %vm127, %v126
    // Predicated region
    $region26: #{tpu_custom_call.1} parent=1 // pred_check
      %p130 = pneg %p48
    $region27: #{tpu_custom_call.1} parent=1 // pred_check_branch
      %132 = sbr.rel (%p130) target = $region29
    $region28: #{tpu_custom_call.1} parent=1 // pred_region
      %v133 = vld [vmem:[#allocation2] sm:$0xff]
      %v134 = vld [vmem:[#allocation2 + $0x8] sm:$0xff]
      %v135 = vld [vmem:[%s2] sm:$0x1]
      %v137 = vlaneseq
      %v138 = vshrl.u32 %v137, 7
      %v139 = vsub.s32 0, %v138
      %v140 = vrot.slane %v135, %v139
      %v142 = vadd.f32 %v133, %v140
      %v143 = vadd.f32 %v134, %v140
      %v144 = vpack.c.bf16 %v143, %v142
      %v146 = vunpack.c.l.b16 %v144
      %v147 = vunpack.c.h.b16 %v144
      %v148 = vpack.c.b16 %v146, %v146
      %v149 = vpack.c.b16 %v147, %v147
      %vm152 = vcmask 257024
      %153 = vst.msk [vmem:[#allocation8] sm:$0xf] %vm152, %v148
      %154 = vst.msk [vmem:[#allocation8 + $0x4] sm:$0xf] %vm152, %v149
      %155 = vrot.lane.b32.xlu0 %v148, 96
      %v156 = vpop.permute.xlu0 %155
      %157 = vrot.lane.b32.xlu0 %v149, 96
      %v158 = vpop.permute.xlu0 %157
      %161 = vst.msk [vmem:[#allocation9] sm:$0xf] %vm152, %v156
      %162 = vst.msk [vmem:[#allocation9 + $0x4] sm:$0xf] %vm152, %v158
      %163 = vrot.lane.b32.xlu0 %v148, 64
      %v164 = vpop.permute.xlu0 %163
      %165 = vrot.lane.b32.xlu0 %v149, 64
      %v166 = vpop.permute.xlu0 %165
      %169 = vst.msk [vmem:[#allocation11] sm:$0xf] %vm152, %v164
      %170 = vst.msk [vmem:[#allocation11 + $0x4] sm:$0xf] %vm152, %v166
    $region29: #{tpu_custom_call.1} parent=1 // pred_fallthru
      _
    // Predicated region
    $region30: #{tpu_custom_call.1} parent=1 // pred_check
      _
    $region31: #{tpu_custom_call.1} parent=1 // pred_check_branch
      %172 = sbr.rel (0) target = $region33
    $region32: #{tpu_custom_call.1} parent=1 // pred_region
      %s174 = ssub.s32 128, 128
      %175 = vsyncadd [#allocation5], %s174
      %s176 = sshll.u32 [#allocation8], 4
      %s177 = int_to_ptr.vmem [resolvable:$true] %s176
      %182 = dma.vmem_to_hbm [thread:$0]  %s177, 128, %s3, [#allocation5], 64, 64, 4
    $region33: #{tpu_custom_call.1} parent=1 // pred_fallthru
      _
    // Predicated region
    $region34: #{tpu_custom_call.1} parent=1 // pred_check
      _
    $region35: #{tpu_custom_call.1} parent=1 // pred_check_branch
      %184 = sbr.rel (0) target = $region37
    $region36: #{tpu_custom_call.1} parent=1 // pred_region
      %s186 = ssub.s32 128, 128
      %187 = vsyncadd [#allocation10], %s186
      %s188 = sshll.u32 [#allocation9], 4
      %s189 = int_to_ptr.vmem [resolvable:$true] %s188
      %194 = dma.vmem_to_hbm [thread:$0]  %s189, 128, %s4, [#allocation10], 64, 64, 4
    $region37: #{tpu_custom_call.1} parent=1 // pred_fallthru
      _
    // Predicated region
    $region38: #{tpu_custom_call.1} parent=1 // pred_check
      _
    $region39: #{tpu_custom_call.1} parent=1 // pred_check_branch
      %196 = sbr.rel (0) target = $region41
    $region40: #{tpu_custom_call.1} parent=1 // pred_region
      %s198 = ssub.s32 128, 128
      %199 = vsyncadd [#allocation10], %s198
      %s200 = sshll.u32 [#allocation11], 4
      %s201 = int_to_ptr.vmem [resolvable:$true] %s200
      %206 = dma.vmem_to_hbm [thread:$0]  %s201, 128, %s5, [#allocation10], 64, 64, 4
    $region41: #{tpu_custom_call.1} parent=1 // pred_fallthru
      _
    // Predicated region
    $region42: #{tpu_custom_call.1} parent=1 // pred_check
      _
    $region43: #{tpu_custom_call.1} parent=1 // pred_check_branch
      %208 = sbr.rel (0) target = $region45
    $region44: #{tpu_custom_call.1} parent=1 // pred_region
      %209 = dma.done [#allocation5], 128
    $region45: #{tpu_custom_call.1} parent=1 // pred_fallthru
      _
    // Predicated region
    $region46: #{tpu_custom_call.1} parent=1 // pred_check
      _
    $region47: #{tpu_custom_call.1} parent=1 // pred_check_branch
      %211 = sbr.rel (0) target = $region49
    $region48: #{tpu_custom_call.1} parent=1 // pred_region
      %212 = dma.done [#allocation10], 128
    $region49: #{tpu_custom_call.1} parent=1 // pred_fallthru
      _
    // Predicated region
    $region50: #{tpu_custom_call.1} parent=1 // pred_check
      _
    $region51: #{tpu_custom_call.1} parent=1 // pred_check_branch
      %214 = sbr.rel (0) target = $region53
    $region52: #{tpu_custom_call.1} parent=1 // pred_region
      %215 = dma.done [#allocation10], 128
    $region53: #{tpu_custom_call.1} parent=1 // pred_fallthru
      _
    %216 = vsyncpa [#allocation4], 1
    %217 = vsyncpa [#allocation7], 1
    %218 = vsyncpa [#allocation5], 1
    %219 = vsyncpa [#allocation10], 1

</llo_original>
